<compile_context>
chip_gen: v7x
topology: tpu7x:2x2x1
jax: 0.10.0
libtpu: 0.0.40
codegen_flags: <defaults>
</compile_context>

<pallas_src>
import jax
import jax.numpy as jnp
from jax.experimental import pallas as pl
from jax.experimental.pallas import tpu as pltpu

EPS = 1e-5
_TARGET_LANES = 32768                 # lanes per tiled-path grid step
_FUSED_ACT_BYTES = 6 * 1024 * 1024    # x+out budget for the single-call path
_MAX_NB = 16                          # bound in-kernel unroll over samples


# ---------------------------------------------------------------------------
# In-kernel helpers
# ---------------------------------------------------------------------------

def _lane_partials(x2d, want_sq=True):
    """Per-row sum (and optionally sum-of-squares) of a (c, m) f32 block,
    accumulated with plain VPU adds into a lane-dense (c, 128) partial, so only
    a single tiny cross-lane fold is ever left for the XLU / host."""
    c, m = x2d.shape
    if m % 128 != 0:
        # Ragged lane count (e.g. 7x7 maps): plain reduce into lane 0 of a
        # zero-filled (c, 128) partial so output shapes stay uniform.
        lane = jax.lax.broadcasted_iota(jnp.int32, (c, 128), 1)
        zero = jnp.zeros((c, 128), jnp.float32)
        s = jnp.where(lane == 0, jnp.sum(x2d, axis=-1, keepdims=True), zero)
        if not want_sq:
            return s, None
        ss = jnp.where(lane == 0, jnp.sum(x2d * x2d, axis=-1, keepdims=True), zero)
        return s, ss

    chunk = 128
    for cand in (1024, 512, 256):
        if m % cand == 0:
            chunk = cand
            break
    acc = x2d[:, :chunk]
    acc2 = acc * acc if want_sq else None
    for j in range(1, m // chunk):
        blk = x2d[:, j * chunk:(j + 1) * chunk]
        acc = acc + blk
        if want_sq:
            acc2 = acc2 + blk * blk
    s = acc[:, :128]
    ss = acc2[:, :128] if want_sq else None
    for j in range(1, chunk // 128):
        s = s + acc[:, j * 128:(j + 1) * 128]
        if want_sq:
            ss = ss + acc2[:, j * 128:(j + 1) * 128]
    return s, ss


def _affine_from_moments(sum_, sumsq, count, gamma, beta):
    """BatchNorm scale/shift (c, 1) from per-channel sum / sum-of-squares."""
    mean = sum_ / count
    # NOTE: E[x^2] - mean^2 can cancel for strongly non-centered inputs; the
    # clamp keeps it non-negative (fine for this module at 2e-4 tolerance).
    var = jnp.maximum(sumsq / count - mean * mean, 0.0)
    scale = gamma * jax.lax.rsqrt(var + EPS)
    shift = beta - mean * scale
    return scale.reshape(-1, 1), shift.reshape(-1, 1)


# ---------------------------------------------------------------------------
# Fused single-call kernel (activations VMEM-resident)
# ---------------------------------------------------------------------------

def _fused_kernel(x_ref, w_ref, g1_ref, b1_ref, g2_ref, b2_ref, o_ref):
    n, _, hw = x_ref.shape
    count = float(n * hw)

    # ---- BN1 batch statistics of x ---------------------------------------
    s, ss = _lane_partials(x_ref[0])
    for i in range(1, n):
        a, a2 = _lane_partials(x_ref[i])
        s, ss = s + a, ss + a2
    sum_x = jnp.sum(s, axis=-1, keepdims=True)
    ssq_x = jnp.sum(ss, axis=-1, keepdims=True)
    scale1, shift1 = _affine_from_moments(sum_x, ssq_x, count,
                                          g1_ref[...], b1_ref[...])

    # ---- BN1 + ReLU + 1x1 conv (MXU); y parked in the output block -------
    sy = ssy = None
    for i in range(n):
        r = jnp.maximum(x_ref[i] * scale1 + shift1, 0.0)
        y = jnp.dot(w_ref[...], r, preferred_element_type=jnp.float32)
        o_ref[i] = y
        a, a2 = _lane_partials(y)
        sy = a if sy is None else sy + a
        ssy = a2 if ssy is None else ssy + a2
    sum_y = jnp.sum(sy, axis=-1, keepdims=True)
    ssq_y = jnp.sum(ssy, axis=-1, keepdims=True)
    scale2, shift2 = _affine_from_moments(sum_y, ssq_y, count,
                                          g2_ref[...], b2_ref[...])

    # ---- BN2 affine, in place on the output block -------------------------
    for i in range(n):
        o_ref[i] = o_ref[i] * scale2 + shift2


def _fused_forward(x3, w, g1, b1, g2, b2):
    n, _, hw = x3.shape
    c_out = w.shape[0]
    return pl.pallas_call(
        _fused_kernel,
        out_shape=jax.ShapeDtypeStruct((n, c_out, hw), jnp.float32),
        compiler_params=pltpu.CompilerParams(vmem_limit_bytes=32 * 1024 * 1024),
    )(x3, w, g1.reshape(-1, 1), b1.reshape(-1, 1),
      g2.reshape(-1, 1), b2.reshape(-1, 1))


# ---------------------------------------------------------------------------
# Tiled fallback kernels (no y intermediate in HBM)
# ---------------------------------------------------------------------------

def _stats_x_kernel(x_ref, s_ref, ss_ref):
    # x_ref: (nb, C_in, Mt) -> lane-dense (C_in, 128) partial sum / sumsq.
    s, ss = _lane_partials(x_ref[0])
    for i in range(1, x_ref.shape[0]):
        a, a2 = _lane_partials(x_ref[i])
        s, ss = s + a, ss + a2
    s_ref[0] = s
    ss_ref[0] = ss


def _r_stats_kernel(x_ref, s1_ref, t1_ref, sr_ref, g_ref):
    # r = relu(BN1(x)); emit per-tile sum(r) partials and Gram G = r @ r^T
    # (tiny MXU op), from which BN2 statistics are derived on the host.
    nb, c_in, _ = x_ref.shape
    sr = jnp.zeros((c_in, 128), jnp.float32)
    gram = jnp.zeros((c_in, c_in), jnp.float32)
    for i in range(nb):
        r = jnp.maximum(x_ref[i] * s1_ref[...] + t1_ref[...], 0.0)
        a, _ = _lane_partials(r, want_sq=False)
        sr = sr + a
        gram = gram + jax.lax.dot_general(
            r, r, (((1,), (1,)), ((), ())), preferred_element_type=jnp.float32)
    sr_ref[0] = sr
    g_ref[0] = gram


def _apply_kernel(x_ref, s1_ref, t1_ref, w_ref, sh2_ref, o_ref):
    # out = (scale2*W) @ relu(BN1(x)) + shift2, streamed straight from x.
    for i in range(x_ref.shape[0]):
        r = jnp.maximum(x_ref[i] * s1_ref[...] + t1_ref[...], 0.0)
        o_ref[i] = (jnp.dot(w_ref[...], r, preferred_element_type=jnp.float32)
                    + sh2_ref[...])


def _pick_m_tile(hw):
    """Largest multiple of 128 <= _TARGET_LANES that divides hw (else full hw)."""
    if hw % 128 != 0:
        return hw
    t = min(_TARGET_LANES, hw)
    t -= t % 128
    while hw % t != 0:
        t -= 128
    return t


def _tiled_forward(x3, w, g1, b1, g2, b2):
    n, c_in, hw = x3.shape
    c_out = w.shape[0]
    count = jnp.float32(n * hw)

    mt = _pick_m_tile(hw)
    n_mt = hw // mt
    nb = 1
    if n_mt == 1:  # small / ragged H*W: group several samples per grid step
        nb = max(1, min(n, _MAX_NB, _TARGET_LANES // max(hw, 1)))
        while n % nb:
            nb -= 1
    n_steps = (n // nb) * n_mt

    par = pltpu.CompilerParams(dimension_semantics=("parallel",))
    x_spec = pl.BlockSpec((nb, c_in, mt), lambda i: (i // n_mt, 0, i % n_mt))
    o_spec = pl.BlockSpec((nb, c_out, mt), lambda i: (i // n_mt, 0, i % n_mt))
    vec = lambda c: pl.BlockSpec((c, 1), lambda i: (0, 0))            # resident
    part_spec = lambda c: pl.BlockSpec((1, c, 128), lambda i: (i, 0, 0))
    part_shape = lambda c: jax.ShapeDtypeStruct((n_steps, c, 128), jnp.float32)

    # ---- pass A: BN1 batch statistics of x --------------------------------
    s_p, ss_p = pl.pallas_call(
        _stats_x_kernel,
        grid=(n_steps,),
        in_specs=[x_spec],
        out_specs=[part_spec(c_in), part_spec(c_in)],
        out_shape=[part_shape(c_in), part_shape(c_in)],
        compiler_params=par,
    )(x3)
    scale1, shift1 = _affine_from_moments(
        jnp.sum(s_p, axis=(0, 2)), jnp.sum(ss_p, axis=(0, 2)), count, g1, b1)

    # ---- pass B: stats of r = relu(BN1(x)) and its Gram matrix ------------
    sr_p, g_p = pl.pallas_call(
        _r_stats_kernel,
        grid=(n_steps,),
        in_specs=[x_spec, vec(c_in), vec(c_in)],
        out_specs=[part_spec(c_in),
                   pl.BlockSpec((1, c_in, c_in), lambda i: (i, 0, 0))],
        out_shape=[part_shape(c_in),
                   jax.ShapeDtypeStruct((n_steps, c_in, c_in), jnp.float32)],
        compiler_params=par,
    )(x3, scale1, shift1)
    sum_r = jnp.sum(sr_p, axis=(0, 2))                  # (C_in,)
    gram = jnp.sum(g_p, axis=0)                         # (C_in, C_in)
    sum_y = w @ sum_r                                   # (C_out,)
    ssq_y = jnp.sum((w @ gram) * w, axis=-1)            # diag(W G W^T)
    scale2, shift2 = _affine_from_moments(sum_y, ssq_y, count, g2, b2)
    w_eff = scale2 * w                                  # fold BN2 scale into conv

    # ---- pass C: out = W' @ relu(BN1(x)) + shift2 --------------------------
    return pl.pallas_call(
        _apply_kernel,
        grid=(n_steps,),
        in_specs=[x_spec, vec(c_in), vec(c_in),
                  pl.BlockSpec((c_out, c_in), lambda i: (0, 0)), vec(c_out)],
        out_specs=o_spec,
        out_shape=jax.ShapeDtypeStruct((n, c_out, hw), jnp.float32),
        compiler_params=par,
    )(x3, scale1, shift1, w_eff, shift2)


# ---------------------------------------------------------------------------
# Public wrapper
# ---------------------------------------------------------------------------

def _forward(x_nchw, w, g1, b1, g2, b2, force_tiled=False):
    n, c_in, h, wd = x_nchw.shape
    c_out = w.shape[0]
    hw = h * wd
    x3 = x_nchw.reshape(n, c_in, hw)      # free reshape: channel rows contiguous
    act_bytes = 4 * n * hw * (c_in + c_out)
    if force_tiled or act_bytes > _FUSED_ACT_BYTES or n > _MAX_NB:
        out3 = _tiled_forward(x3, w, g1, b1, g2, b2)
    else:
        out3 = _fused_forward(x3, w, g1, b1, g2, b2)
    return out3.reshape(n, c_out, h, wd)


fused_bn_relu_conv_bn = jax.jit(_forward, static_argnames=("force_tiled",))


# ---------------------------------------------------------------------------
# Pure-JAX reference (PyTorch training-mode forward semantics) and test
# ---------------------------------------------------------------------------

def _reference(x, w, g1, b1, g2, b2):
    def bn(t, g, b):
        mean = jnp.mean(t, axis=(0, 2, 3), keepdims=True)
        var = jnp.mean((t - mean) ** 2, axis=(0, 2, 3), keepdims=True)
        return ((t - mean) * jax.lax.rsqrt(var + EPS) * g.reshape(1, -1, 1, 1)
                + b.reshape(1, -1, 1, 1))
    r = jnp.maximum(bn(x, g1, b1), 0.0)
    y = jnp.einsum("oc,nchw->nohw", w, r)
    return bn(y, g2, b2)


if __name__ == "__main__":
    key = jax.random.PRNGKey(0)
    ks = jax.random.split(key, 6)

    # Small test shape (the module fixes C_in=16, C_out=8).
    N, C_IN, H, W = 2, 16, 16, 16
    C_OUT = 8

    x = jax.random.normal(ks[0], (N, C_IN, H, W), dtype=jnp.float32)
    w = 0.1 * jax.random.normal(ks[1], (C_OUT, C_IN), dtype=jnp.float32)
    g1 = 1.0 + 0.1 * jax.random.normal(ks[2], (C_IN,), dtype=jnp.float32)
    b1 = 0.1 * jax.random.normal(ks[3], (C_IN,), dtype=jnp.float32)
    g2 = 1.0 + 0.1 * jax.random.normal(ks[4], (C_OUT,), dtype=jnp.float32)
    b2 = 0.1 * jax.random.normal(ks[5], (C_OUT,), dtype=jnp.float32)

    ref = _reference(x, w, g1, b1, g2, b2)

    # Fused (single pallas_call, VMEM-resident) path.
    out = jax.block_until_ready(fused_bn_relu_conv_bn(x, w, g1, b1, g2, b2))
    assert out.shape == ref.shape
    assert jnp.allclose(out, ref, atol=2e-4, rtol=2e-4), \
        float(jnp.max(jnp.abs(out - ref)))

    # Tiled fallback path (exercised explicitly so it stays tested).
    out_t = jax.block_until_ready(
        fused_bn_relu_conv_bn(x, w, g1, b1, g2, b2, force_tiled=True))
    assert jnp.allclose(out_t, ref, atol=2e-4, rtol=2e-4), \
        float(jnp.max(jnp.abs(out_t - ref)))

    # The module's nominal input shape (1, 16, 112, 112) -- still VMEM-fused.
    x_full = jax.random.normal(ks[0], (1, C_IN, 112, 112), dtype=jnp.float32)
    ref_full = _reference(x_full, w, g1, b1, g2, b2)
    out_full = jax.block_until_ready(
        fused_bn_relu_conv_bn(x_full, w, g1, b1, g2, b2))
    assert jnp.allclose(out_full, ref_full, atol=2e-4, rtol=2e-4), \
        float(jnp.max(jnp.abs(out_full - ref_full)))

    print("KERNEL_OK")
</pallas_src>

<mosaic_0001>
module attributes {stable_mosaic.version = 11 : i64} {
  func.func @_fused_kernel(%arg0: memref<2x16x256xf32, #tpu.memory_space<vmem>>, %arg1: memref<8x16xf32, #tpu.memory_space<vmem>>, %arg2: memref<16x1xf32, #tpu.memory_space<vmem>>, %arg3: memref<16x1xf32, #tpu.memory_space<vmem>>, %arg4: memref<8x1xf32, #tpu.memory_space<vmem>>, %arg5: memref<8x1xf32, #tpu.memory_space<vmem>>, %arg6: memref<2x8x256xf32, #tpu.memory_space<vmem>>) attributes {dimension_semantics = [], scalar_prefetch = 0 : i64, scratch_operands = 0 : i64, tpu.core_type = #tpu.core_type<tc>} {
    %c0 = arith.constant 0 : index
    %c0_0 = arith.constant 0 : index
    %c0_1 = arith.constant 0 : index
    %0 = vector.load %arg0[%c0, %c0_0, %c0_1] : memref<2x16x256xf32, #tpu.memory_space<vmem>>, vector<1x16x256xf32>
    %1 = vector.shape_cast %0 : vector<1x16x256xf32> to vector<16x256xf32>
    %2 = arith.mulf %1, %1 : vector<16x256xf32>
    %3 = vector.extract_strided_slice %1 {offsets = [0, 0], sizes = [16, 128], strides = [1, 1]} : vector<16x256xf32> to vector<16x128xf32>
    %4 = vector.extract_strided_slice %2 {offsets = [0, 0], sizes = [16, 128], strides = [1, 1]} : vector<16x256xf32> to vector<16x128xf32>
    %5 = vector.extract_strided_slice %1 {offsets = [0, 128], sizes = [16, 128], strides = [1, 1]} : vector<16x256xf32> to vector<16x128xf32>
    %6 = arith.addf %3, %5 : vector<16x128xf32>
    %7 = vector.extract_strided_slice %2 {offsets = [0, 128], sizes = [16, 128], strides = [1, 1]} : vector<16x256xf32> to vector<16x128xf32>
    %8 = arith.addf %4, %7 : vector<16x128xf32>
    %c1 = arith.constant 1 : index
    %c0_2 = arith.constant 0 : index
    %c0_3 = arith.constant 0 : index
    %9 = vector.load %arg0[%c1, %c0_2, %c0_3] : memref<2x16x256xf32, #tpu.memory_space<vmem>>, vector<1x16x256xf32>
    %10 = vector.shape_cast %9 : vector<1x16x256xf32> to vector<16x256xf32>
    %11 = arith.mulf %10, %10 : vector<16x256xf32>
    %12 = vector.extract_strided_slice %10 {offsets = [0, 0], sizes = [16, 128], strides = [1, 1]} : vector<16x256xf32> to vector<16x128xf32>
    %13 = vector.extract_strided_slice %11 {offsets = [0, 0], sizes = [16, 128], strides = [1, 1]} : vector<16x256xf32> to vector<16x128xf32>
    %14 = vector.extract_strided_slice %10 {offsets = [0, 128], sizes = [16, 128], strides = [1, 1]} : vector<16x256xf32> to vector<16x128xf32>
    %15 = arith.addf %12, %14 : vector<16x128xf32>
    %16 = vector.extract_strided_slice %11 {offsets = [0, 128], sizes = [16, 128], strides = [1, 1]} : vector<16x256xf32> to vector<16x128xf32>
    %17 = arith.addf %13, %16 : vector<16x128xf32>
    %18 = arith.addf %6, %15 : vector<16x128xf32>
    %19 = arith.addf %8, %17 : vector<16x128xf32>
    %cst = arith.constant dense<0.000000e+00> : vector<16xf32>
    %20 = vector.multi_reduction <add>, %18, %cst [1] : vector<16x128xf32> to vector<16xf32>
    %21 = vector.shape_cast %20 : vector<16xf32> to vector<16x1xf32>
    %cst_4 = arith.constant dense<0.000000e+00> : vector<16xf32>
    %22 = vector.multi_reduction <add>, %19, %cst_4 [1] : vector<16x128xf32> to vector<16xf32>
    %23 = vector.shape_cast %22 : vector<16xf32> to vector<16x1xf32>
    %c0_5 = arith.constant 0 : index
    %c0_6 = arith.constant 0 : index
    %24 = vector.load %arg2[%c0_5, %c0_6] : memref<16x1xf32, #tpu.memory_space<vmem>>, vector<16x1xf32>
    %c0_7 = arith.constant 0 : index
    %c0_8 = arith.constant 0 : index
    %25 = vector.load %arg3[%c0_7, %c0_8] : memref<16x1xf32, #tpu.memory_space<vmem>>, vector<16x1xf32>
    %cst_9 = arith.constant 5.120000e+02 : f32
    %26 = vector.broadcast %cst_9 : f32 to vector<16x1xf32>
    %27 = arith.divf %21, %26 : vector<16x1xf32>
    %cst_10 = arith.constant 5.120000e+02 : f32
    %28 = vector.broadcast %cst_10 : f32 to vector<16x1xf32>
    %29 = arith.divf %23, %28 : vector<16x1xf32>
    %30 = arith.mulf %27, %27 : vector<16x1xf32>
    %31 = arith.subf %29, %30 : vector<16x1xf32>
    %cst_11 = arith.constant 0.000000e+00 : f32
    %32 = vector.broadcast %cst_11 : f32 to vector<16x1xf32>
    %33 = arith.maximumf %31, %32 : vector<16x1xf32>
    %cst_12 = arith.constant 9.99999974E-6 : f32
    %34 = vector.broadcast %cst_12 : f32 to vector<16x1xf32>
    %35 = arith.addf %33, %34 : vector<16x1xf32>
    %36 = math.rsqrt %35 : vector<16x1xf32>
    %37 = arith.mulf %24, %36 : vector<16x1xf32>
    %38 = arith.mulf %27, %37 : vector<16x1xf32>
    %39 = arith.subf %25, %38 : vector<16x1xf32>
    %c0_13 = arith.constant 0 : index
    %c0_14 = arith.constant 0 : index
    %c0_15 = arith.constant 0 : index
    %40 = vector.load %arg0[%c0_13, %c0_14, %c0_15] : memref<2x16x256xf32, #tpu.memory_space<vmem>>, vector<1x16x256xf32>
    %41 = vector.shape_cast %40 : vector<1x16x256xf32> to vector<16x256xf32>
    %42 = vector.broadcast %37 : vector<16x1xf32> to vector<16x256xf32>
    %43 = arith.mulf %41, %42 : vector<16x256xf32>
    %44 = vector.broadcast %39 : vector<16x1xf32> to vector<16x256xf32>
    %45 = arith.addf %43, %44 : vector<16x256xf32>
    %cst_16 = arith.constant 0.000000e+00 : f32
    %46 = vector.broadcast %cst_16 : f32 to vector<16x256xf32>
    %47 = arith.maximumf %45, %46 : vector<16x256xf32>
    %c0_17 = arith.constant 0 : index
    %c0_18 = arith.constant 0 : index
    %48 = vector.load %arg1[%c0_17, %c0_18] : memref<8x16xf32, #tpu.memory_space<vmem>>, vector<8x16xf32>
    %cst_19 = arith.constant dense<0.000000e+00> : vector<8x256xf32>
    %49 = tpu.matmul %48, %47, %cst_19 {dimension_numbers = #tpu.dot_dimension_numbers<[1], [0], [0], [1], [0, 0, 1, 1], [], []>} : vector<8x16xf32>, vector<16x256xf32>, vector<8x256xf32> -> vector<8x256xf32>
    %c0_20 = arith.constant 0 : index
    %c0_21 = arith.constant 0 : index
    %c0_22 = arith.constant 0 : index
    %50 = vector.load %arg6[%c0_20, %c0_21, %c0_22] : memref<2x8x256xf32, #tpu.memory_space<vmem>>, vector<1x8x256xf32>
    %51 = vector.shape_cast %50 : vector<1x8x256xf32> to vector<8x256xf32>
    %52 = vector.shape_cast %49 : vector<8x256xf32> to vector<1x8x256xf32>
    tpu.vector_store %arg6[%c0_20, %c0_21, %c0_22], %52 {strides = array<i32>} : memref<2x8x256xf32, #tpu.memory_space<vmem>>, vector<1x8x256xf32>,
    %53 = arith.mulf %49, %49 : vector<8x256xf32>
    %54 = vector.extract_strided_slice %49 {offsets = [0, 0], sizes = [8, 128], strides = [1, 1]} : vector<8x256xf32> to vector<8x128xf32>
    %55 = vector.extract_strided_slice %53 {offsets = [0, 0], sizes = [8, 128], strides = [1, 1]} : vector<8x256xf32> to vector<8x128xf32>
    %56 = vector.extract_strided_slice %49 {offsets = [0, 128], sizes = [8, 128], strides = [1, 1]} : vector<8x256xf32> to vector<8x128xf32>
    %57 = arith.addf %54, %56 : vector<8x128xf32>
    %58 = vector.extract_strided_slice %53 {offsets = [0, 128], sizes = [8, 128], strides = [1, 1]} : vector<8x256xf32> to vector<8x128xf32>
    %59 = arith.addf %55, %58 : vector<8x128xf32>
    %c1_23 = arith.constant 1 : index
    %c0_24 = arith.constant 0 : index
    %c0_25 = arith.constant 0 : index
    %60 = vector.load %arg0[%c1_23, %c0_24, %c0_25] : memref<2x16x256xf32, #tpu.memory_space<vmem>>, vector<1x16x256xf32>
    %61 = vector.shape_cast %60 : vector<1x16x256xf32> to vector<16x256xf32>
    %62 = vector.broadcast %37 : vector<16x1xf32> to vector<16x256xf32>
    %63 = arith.mulf %61, %62 : vector<16x256xf32>
    %64 = vector.broadcast %39 : vector<16x1xf32> to vector<16x256xf32>
    %65 = arith.addf %63, %64 : vector<16x256xf32>
    %cst_26 = arith.constant 0.000000e+00 : f32
    %66 = vector.broadcast %cst_26 : f32 to vector<16x256xf32>
    %67 = arith.maximumf %65, %66 : vector<16x256xf32>
    %c0_27 = arith.constant 0 : index
    %c0_28 = arith.constant 0 : index
    %68 = vector.load %arg1[%c0_27, %c0_28] : memref<8x16xf32, #tpu.memory_space<vmem>>, vector<8x16xf32>
    %cst_29 = arith.constant dense<0.000000e+00> : vector<8x256xf32>
    %69 = tpu.matmul %68, %67, %cst_29 {dimension_numbers = #tpu.dot_dimension_numbers<[1], [0], [0], [1], [0, 0, 1, 1], [], []>} : vector<8x16xf32>, vector<16x256xf32>, vector<8x256xf32> -> vector<8x256xf32>
    %c1_30 = arith.constant 1 : index
    %c0_31 = arith.constant 0 : index
    %c0_32 = arith.constant 0 : index
    %70 = vector.load %arg6[%c1_30, %c0_31, %c0_32] : memref<2x8x256xf32, #tpu.memory_space<vmem>>, vector<1x8x256xf32>
    %71 = vector.shape_cast %70 : vector<1x8x256xf32> to vector<8x256xf32>
    %72 = vector.shape_cast %69 : vector<8x256xf32> to vector<1x8x256xf32>
    tpu.vector_store %arg6[%c1_30, %c0_31, %c0_32], %72 {strides = array<i32>} : memref<2x8x256xf32, #tpu.memory_space<vmem>>, vector<1x8x256xf32>,
    %73 = arith.mulf %69, %69 : vector<8x256xf32>
    %74 = vector.extract_strided_slice %69 {offsets = [0, 0], sizes = [8, 128], strides = [1, 1]} : vector<8x256xf32> to vector<8x128xf32>
    %75 = vector.extract_strided_slice %73 {offsets = [0, 0], sizes = [8, 128], strides = [1, 1]} : vector<8x256xf32> to vector<8x128xf32>
    %76 = vector.extract_strided_slice %69 {offsets = [0, 128], sizes = [8, 128], strides = [1, 1]} : vector<8x256xf32> to vector<8x128xf32>
    %77 = arith.addf %74, %76 : vector<8x128xf32>
    %78 = vector.extract_strided_slice %73 {offsets = [0, 128], sizes = [8, 128], strides = [1, 1]} : vector<8x256xf32> to vector<8x128xf32>
    %79 = arith.addf %75, %78 : vector<8x128xf32>
    %80 = arith.addf %57, %77 : vector<8x128xf32>
    %81 = arith.addf %59, %79 : vector<8x128xf32>
    %cst_33 = arith.constant dense<0.000000e+00> : vector<8xf32>
    %82 = vector.multi_reduction <add>, %80, %cst_33 [1] : vector<8x128xf32> to vector<8xf32>
    %83 = vector.shape_cast %82 : vector<8xf32> to vector<8x1xf32>
    %cst_34 = arith.constant dense<0.000000e+00> : vector<8xf32>
    %84 = vector.multi_reduction <add>, %81, %cst_34 [1] : vector<8x128xf32> to vector<8xf32>
    %85 = vector.shape_cast %84 : vector<8xf32> to vector<8x1xf32>
    %c0_35 = arith.constant 0 : index
    %c0_36 = arith.constant 0 : index
    %86 = vector.load %arg4[%c0_35, %c0_36] : memref<8x1xf32, #tpu.memory_space<vmem>>, vector<8x1xf32>
    %c0_37 = arith.constant 0 : index
    %c0_38 = arith.constant 0 : index
    %87 = vector.load %arg5[%c0_37, %c0_38] : memref<8x1xf32, #tpu.memory_space<vmem>>, vector<8x1xf32>
    %cst_39 = arith.constant 5.120000e+02 : f32
    %88 = vector.broadcast %cst_39 : f32 to vector<8x1xf32>
    %89 = arith.divf %83, %88 : vector<8x1xf32>
    %cst_40 = arith.constant 5.120000e+02 : f32
    %90 = vector.broadcast %cst_40 : f32 to vector<8x1xf32>
    %91 = arith.divf %85, %90 : vector<8x1xf32>
    %92 = arith.mulf %89, %89 : vector<8x1xf32>
    %93 = arith.subf %91, %92 : vector<8x1xf32>
    %cst_41 = arith.constant 0.000000e+00 : f32
    %94 = vector.broadcast %cst_41 : f32 to vector<8x1xf32>
    %95 = arith.maximumf %93, %94 : vector<8x1xf32>
    %cst_42 = arith.constant 9.99999974E-6 : f32
    %96 = vector.broadcast %cst_42 : f32 to vector<8x1xf32>
    %97 = arith.addf %95, %96 : vector<8x1xf32>
    %98 = math.rsqrt %97 : vector<8x1xf32>
    %99 = arith.mulf %86, %98 : vector<8x1xf32>
    %100 = arith.mulf %89, %99 : vector<8x1xf32>
    %101 = arith.subf %87, %100 : vector<8x1xf32>
    %c0_43 = arith.constant 0 : index
    %c0_44 = arith.constant 0 : index
    %c0_45 = arith.constant 0 : index
    %102 = vector.load %arg6[%c0_43, %c0_44, %c0_45] : memref<2x8x256xf32, #tpu.memory_space<vmem>>, vector<1x8x256xf32>
    %103 = vector.shape_cast %102 : vector<1x8x256xf32> to vector<8x256xf32>
    %104 = vector.broadcast %99 : vector<8x1xf32> to vector<8x256xf32>
    %105 = arith.mulf %103, %104 : vector<8x256xf32>
    %106 = vector.broadcast %101 : vector<8x1xf32> to vector<8x256xf32>
    %107 = arith.addf %105, %106 : vector<8x256xf32>
    %c0_46 = arith.constant 0 : index
    %c0_47 = arith.constant 0 : index
    %c0_48 = arith.constant 0 : index
    %108 = vector.load %arg6[%c0_46, %c0_47, %c0_48] : memref<2x8x256xf32, #tpu.memory_space<vmem>>, vector<1x8x256xf32>
    %109 = vector.shape_cast %108 : vector<1x8x256xf32> to vector<8x256xf32>
    %110 = vector.shape_cast %107 : vector<8x256xf32> to vector<1x8x256xf32>
    tpu.vector_store %arg6[%c0_46, %c0_47, %c0_48], %110 {strides = array<i32>} : memref<2x8x256xf32, #tpu.memory_space<vmem>>, vector<1x8x256xf32>,
    %c1_49 = arith.constant 1 : index
    %c0_50 = arith.constant 0 : index
    %c0_51 = arith.constant 0 : index
    %111 = vector.load %arg6[%c1_49, %c0_50, %c0_51] : memref<2x8x256xf32, #tpu.memory_space<vmem>>, vector<1x8x256xf32>
    %112 = vector.shape_cast %111 : vector<1x8x256xf32> to vector<8x256xf32>
    %113 = vector.broadcast %99 : vector<8x1xf32> to vector<8x256xf32>
    %114 = arith.mulf %112, %113 : vector<8x256xf32>
    %115 = vector.broadcast %101 : vector<8x1xf32> to vector<8x256xf32>
    %116 = arith.addf %114, %115 : vector<8x256xf32>
    %c1_52 = arith.constant 1 : index
    %c0_53 = arith.constant 0 : index
    %c0_54 = arith.constant 0 : index
    %117 = vector.load %arg6[%c1_52, %c0_53, %c0_54] : memref<2x8x256xf32, #tpu.memory_space<vmem>>, vector<1x8x256xf32>
    %118 = vector.shape_cast %117 : vector<1x8x256xf32> to vector<8x256xf32>
    %119 = vector.shape_cast %116 : vector<8x256xf32> to vector<1x8x256xf32>
    tpu.vector_store %arg6[%c1_52, %c0_53, %c0_54], %119 {strides = array<i32>} : memref<2x8x256xf32, #tpu.memory_space<vmem>>, vector<1x8x256xf32>,
    return
  }
}

</mosaic_0001>

<llo_original>
// kernel: _forward.1
$region0: #{_forward.1}
  #allocation0 [shape = 'u32[]', space=smem, size = 0x4, offset = 0x4, fixed_abs, tag = 'smem constant byte address 0x4 - core index']
  #allocation1 [shape = 'u32[144,128]{1,0:T(1,128)}', space=vmem, size = 0x12000, scoped, tag = 'internal scratch']
  %s0 = inlined_call_operand.vmem [shape: f32[2,16,256], index: 0, kind: input, shape index: {}]
  %s1 = inlined_call_operand.vmem [shape: f32[8,16], index: 1, kind: input, shape index: {}]
  %s2 = inlined_call_operand.vmem [shape: f32[16,1], index: 2, kind: input, shape index: {}]
  %s3 = inlined_call_operand.vmem [shape: f32[16,1], index: 3, kind: input, shape index: {}]
  %s4 = inlined_call_operand.vmem [shape: f32[8,1], index: 4, kind: input, shape index: {}]
  %s5 = inlined_call_operand.vmem [shape: f32[8,1], index: 5, kind: input, shape index: {}]
  %s6 = inlined_call_operand.vmem [shape: f32[2,8,256], index: 6, kind: output, shape index: {}]
  %s7 = sld [smem:[#allocation0]]
  $region34: #{_forward.1} parent=0
    _
  %s9 = ssub.s32 1, %s7
  %s10 = scalar_select 0, %s9, %s7
  // Predicated region
  $region2: #{_forward.1} parent=0 // pred_check
    _
  $region3: #{_forward.1} parent=0 // pred_check_branch
    %12 = sbr.rel (0) target = $region5
  $region4: #{_forward.1} parent=0 // pred_region
    _
  $region5: #{_forward.1} parent=0 // pred_fallthru
    _
  // Predicated region
  $region6: #{_forward.1} parent=0 // pred_check
    _
  $region7: #{_forward.1} parent=0 // pred_check_branch
    %14 = sbr.rel (0) target = $region9
  $region8: #{_forward.1} parent=0 // pred_region
    _
  $region9: #{_forward.1} parent=0 // pred_fallthru
    _
  // Predicated region
  $region10: #{_forward.1} parent=0 // pred_check
    _
  $region11: #{_forward.1} parent=0 // pred_check_branch
    %16 = sbr.rel (0) target = $region13
  $region12: #{_forward.1} parent=0 // pred_region
    _
  $region13: #{_forward.1} parent=0 // pred_fallthru
    _
  // Predicated region
  $region14: #{_forward.1} parent=0 // pred_check
    _
  $region15: #{_forward.1} parent=0 // pred_check_branch
    %18 = sbr.rel (0) target = $region17
  $region16: #{_forward.1} parent=0 // pred_region
    _
  $region17: #{_forward.1} parent=0 // pred_fallthru
    _
  // Predicated region
  $region18: #{_forward.1} parent=0 // pred_check
    _
  $region19: #{_forward.1} parent=0 // pred_check_branch
    %20 = sbr.rel (0) target = $region21
  $region20: #{_forward.1} parent=0 // pred_region
    _
  $region21: #{_forward.1} parent=0 // pred_fallthru
    _
  // Predicated region
  $region22: #{_forward.1} parent=0 // pred_check
    _
  $region23: #{_forward.1} parent=0 // pred_check_branch
    %22 = sbr.rel (0) target = $region25
  $region24: #{_forward.1} parent=0 // pred_region
    _
  $region25: #{_forward.1} parent=0 // pred_fallthru
    _
  %v23 = vld [vmem:[%s0] sm:$0xff]
  %v24 = vld [vmem:[%s0 + $0x8] sm:$0xff]
  %v25 = vld [vmem:[%s0 + $0x10] sm:$0xff]
  %v26 = vld [vmem:[%s0 + $0x18] sm:$0xff]
  %v27 = vmul.f32 %v23, %v23
  %v28 = vmul.f32 %v24, %v24
  %v29 = vmul.f32 %v25, %v25
  %v30 = vmul.f32 %v26, %v26
  %v31 = vadd.f32 %v23, %v24
  %v32 = vadd.f32 %v25, %v26
  %v33 = vadd.f32 %v27, %v28
  %v34 = vadd.f32 %v29, %v30
  %s35 = scalar_lea.vmem %s0, 32
  %v36 = vld [vmem:[%s35] sm:$0xff]
  %v37 = vld [vmem:[%s35 + $0x8] sm:$0xff]
  %v38 = vld [vmem:[%s35 + $0x10] sm:$0xff]
  %v39 = vld [vmem:[%s35 + $0x18] sm:$0xff]
  %v40 = vmul.f32 %v36, %v36
  %v41 = vmul.f32 %v37, %v37
  %v42 = vmul.f32 %v38, %v38
  %v43 = vmul.f32 %v39, %v39
  %v44 = vadd.f32 %v36, %v37
  %v45 = vadd.f32 %v38, %v39
  %v46 = vadd.f32 %v40, %v41
  %v47 = vadd.f32 %v42, %v43
  %v48 = vadd.f32 %v31, %v44
  %v49 = vadd.f32 %v32, %v45
  %v50 = vadd.f32 %v33, %v46
  %v51 = vadd.f32 %v34, %v47
  %52 = vadd.xlane.f32.xlu0 %v48
  %v53 = vpop.xlane.xlu0 %52
  %54 = vadd.xlane.f32.xlu0 %v49
  %v55 = vpop.xlane.xlu0 %54
  %56 = vadd.xlane.f32.xlu0 %v50
  %v57 = vpop.xlane.xlu0 %56
  %58 = vadd.xlane.f32.xlu0 %v51
  %v59 = vpop.xlane.xlu0 %58
  %v60 = vld [vmem:[%s2] sm:$0xff]
  %v61 = vld [vmem:[%s2 + $0x8] sm:$0xff]
  %v62 = vld [vmem:[%s3] sm:$0xff]
  %v63 = vld [vmem:[%s3 + $0x8] sm:$0xff]
  %v64 = vrcp.pop 512.0
  %v65 = vmul.f32 %v53, %v64
  %v66 = vmul.f32 %v55, %v64
  %v67 = vmul.f32 %v57, %v64
  %v68 = vmul.f32 %v59, %v64
  %v69 = vmul.f32 %v65, %v65
  %v70 = vmul.f32 %v66, %v66
  %v71 = vsub.f32 %v67, %v69
  %v72 = vsub.f32 %v68, %v70
  %v73 = vmax.f32 %v71, 0.0
  %v74 = vmax.f32 %v72, 0.0
  %v75 = vadd.f32 %v73, 1e-05
  %v76 = vadd.f32 %v74, 1e-05
  %v77 = vrsqrt.pop %v75
  %v78 = vrsqrt.pop %v76
  %v79 = vmul.f32 %v60, %v77
  %v80 = vmul.f32 %v61, %v78
  %v81 = vmul.f32 %v65, %v79
  %v82 = vmul.f32 %v66, %v80
  %v83 = vsub.f32 %v62, %v81
  %v84 = vsub.f32 %v63, %v82
  %86 = vset.pattern.permute.xlu0 0
  %87 = vperm.xlu0 %86, %v79
  %v88 = vpop.permute.xlu0 %87
  %91 = vset.pattern.permute.xlu0 0
  %92 = vperm.xlu0 %91, %v80
  %v93 = vpop.permute.xlu0 %92
  %v95 = vmul.f32 %v23, %v88
  %v96 = vmul.f32 %v24, %v88
  %v97 = vmul.f32 %v25, %v93
  %v98 = vmul.f32 %v26, %v93
  %100 = vset.pattern.permute.xlu0 0
  %101 = vperm.xlu0 %100, %v83
  %v102 = vpop.permute.xlu0 %101
  %105 = vset.pattern.permute.xlu0 0
  %106 = vperm.xlu0 %105, %v84
  %v107 = vpop.permute.xlu0 %106
  %v109 = vadd.f32 %v95, %v102
  %v110 = vadd.f32 %v96, %v102
  %v111 = vadd.f32 %v97, %v107
  %v112 = vadd.f32 %v98, %v107
  %v113 = vmax.f32 %v109, 0.0
  %v114 = vmax.f32 %v110, 0.0
  %v115 = vmax.f32 %v111, 0.0
  %v116 = vmax.f32 %v112, 0.0
  %v117 = vld [vmem:[%s1] sm:$0xff]
  %vm118 = vcmask 130048
  %v120 = vsel %vm118, %v117, 0
  %122 = vmatprep.subr.mxu0 %v114
  %123 = vmatpush1.msra.mxu0 %v113
  %124 = vmatprep.subr.mxu0 %v116
  %125 = vmatpush1.msra.mxu0 %v115
  %126 = vmatprep.subr.mxu0 0.0
  %127 = vmatpush1.msra.mxu0 0.0
  %128 = vmatprep.subr.mxu0 0.0
  %129 = vmatpush1.msra.mxu0 0.0
  %130 = vmatprep.subr.mxu0 0.0
  %131 = vmatpush1.msra.mxu0 0.0
  %132 = vmatprep.subr.mxu0 0.0
  %133 = vmatpush1.msra.mxu0 0.0
  %134 = vmatprep.subr.mxu0 0.0
  %135 = vmatpush1.msra.mxu0 0.0
  %136 = vmatprep.subr.mxu0 0.0
  %137 = vmatpush1.msra.mxu0 0.0
  %138 = vmatprep.subr.mxu0 0.0
  %139 = vmatpush1.msra.mxu0 0.0
  %140 = vmatprep.subr.mxu0 0.0
  %141 = vmatpush1.msra.mxu0 0.0
  %142 = vmatprep.subr.mxu0 0.0
  %143 = vmatpush1.msra.mxu0 0.0
  %144 = vmatprep.subr.mxu0 0.0
  %145 = vmatpush1.msra.mxu0 0.0
  %146 = vmatprep.subr.mxu0 0.0
  %147 = vmatpush1.msra.mxu0 0.0
  %148 = vmatprep.subr.mxu0 0.0
  %149 = vmatpush1.msra.mxu0 0.0
  %150 = vmatprep.subr.mxu0 0.0
  %151 = vmatpush1.msra.mxu0 0.0
  %152 = vmatprep.subr.mxu0 0.0
  %153 = vmatpush1.msra.mxu0 0.0
  %154 = vmatprep.subr.mxu0 0.0
  %155 = vmatpush1.msra.mxu0 0.0
  %156 = vmatprep.subr.mxu0 0.0
  %157 = vmatpush1.msra.mxu0 0.0
  %158 = vmatprep.subr.mxu0 0.0
  %159 = vmatpush1.msra.mxu0 0.0
  %160 = vmatprep.subr.mxu0 0.0
  %161 = vmatpush1.msra.mxu0 0.0
  %162 = vmatprep.subr.mxu0 0.0
  %163 = vmatpush1.msra.mxu0 0.0
  %164 = vmatprep.subr.mxu0 0.0
  %165 = vmatpush1.msra.mxu0 0.0
  %166 = vmatprep.subr.mxu0 0.0
  %167 = vmatpush1.msra.mxu0 0.0
  %168 = vmatprep.subr.mxu0 0.0
  %169 = vmatpush1.msra.mxu0 0.0
  %170 = vmatprep.subr.mxu0 0.0
  %171 = vmatpush1.msra.mxu0 0.0
  %172 = vmatprep.subr.mxu0 0.0
  %173 = vmatpush1.msra.mxu0 0.0
  %174 = vmatprep.subr.mxu0 0.0
  %175 = vmatpush1.msra.mxu0 0.0
  %176 = vmatprep.subr.mxu0 0.0
  %177 = vmatpush1.msra.mxu0 0.0
  %178 = vmatprep.subr.mxu0 0.0
  %179 = vmatpush1.msra.mxu0 0.0
  %180 = vmatprep.subr.mxu0 0.0
  %181 = vmatpush1.msra.mxu0 0.0
  %182 = vmatprep.subr.mxu0 0.0
  %183 = vmatpush1.msra.mxu0 0.0
  %184 = vmatprep.subr.mxu0 0.0
  %185 = vmatpush1.msra.mxu0 0.0
  %186 = vmatprep.mubr.f32.mxu0 0.0
  %187 = vmatmul.mubr.f32.gmra.mrb[0].mxu0 %v120
  %v188 = vpop.f32.mrb[0].mxu0
  %v189 = vadd.f32 0.0, %v188
  %v190 = vpop.f32.mrb[0].mxu0
  %v191 = vadd.f32 0.0, %v190
  %192 = vdwg.mxu0
  %193 = vst [vmem:[%s6] sm:$0xff] %v189
  %194 = vst [vmem:[%s6 + $0x8] sm:$0xff] %v191
  %v195 = vmul.f32 %v189, %v189
  %v196 = vmul.f32 %v191, %v191
  %v197 = vadd.f32 %v189, %v191
  %v198 = vadd.f32 %v195, %v196
  %v199 = vld [vmem:[%s35] sm:$0xff]
  %v200 = vld [vmem:[%s35 + $0x8] sm:$0xff]
  %v201 = vld [vmem:[%s35 + $0x10] sm:$0xff]
  %v202 = vld [vmem:[%s35 + $0x18] sm:$0xff]
  %v203 = vmul.f32 %v199, %v88
  %v204 = vmul.f32 %v200, %v88
  %v205 = vmul.f32 %v201, %v93
  %v206 = vmul.f32 %v202, %v93
  %v207 = vadd.f32 %v203, %v102
  %v208 = vadd.f32 %v204, %v102
  %v209 = vadd.f32 %v205, %v107
  %v210 = vadd.f32 %v206, %v107
  %v211 = vmax.f32 %v207, 0.0
  %v212 = vmax.f32 %v208, 0.0
  %v213 = vmax.f32 %v209, 0.0
  %v214 = vmax.f32 %v210, 0.0
  %v215 = vld [vmem:[%s1] sm:$0xff]
  %v217 = vsel %vm118, %v215, 0
  %219 = vmatprep.subr.mxu0 %v212
  %220 = vmatpush1.msra.mxu0 %v211
  %221 = vmatprep.subr.mxu0 %v214
  %222 = vmatpush1.msra.mxu0 %v213
  %223 = vmatprep.subr.mxu0 0.0
  %224 = vmatpush1.msra.mxu0 0.0
  %225 = vmatprep.subr.mxu0 0.0
  %226 = vmatpush1.msra.mxu0 0.0
  %227 = vmatprep.subr.mxu0 0.0
  %228 = vmatpush1.msra.mxu0 0.0
  %229 = vmatprep.subr.mxu0 0.0
  %230 = vmatpush1.msra.mxu0 0.0
  %231 = vmatprep.subr.mxu0 0.0
  %232 = vmatpush1.msra.mxu0 0.0
  %233 = vmatprep.subr.mxu0 0.0
  %234 = vmatpush1.msra.mxu0 0.0
  %235 = vmatprep.subr.mxu0 0.0
  %236 = vmatpush1.msra.mxu0 0.0
  %237 = vmatprep.subr.mxu0 0.0
  %238 = vmatpush1.msra.mxu0 0.0
  %239 = vmatprep.subr.mxu0 0.0
  %240 = vmatpush1.msra.mxu0 0.0
  %241 = vmatprep.subr.mxu0 0.0
  %242 = vmatpush1.msra.mxu0 0.0
  %243 = vmatprep.subr.mxu0 0.0
  %244 = vmatpush1.msra.mxu0 0.0
  %245 = vmatprep.subr.mxu0 0.0
  %246 = vmatpush1.msra.mxu0 0.0
  %247 = vmatprep.subr.mxu0 0.0
  %248 = vmatpush1.msra.mxu0 0.0
  %249 = vmatprep.subr.mxu0 0.0
  %250 = vmatpush1.msra.mxu0 0.0
  %251 = vmatprep.subr.mxu0 0.0
  %252 = vmatpush1.msra.mxu0 0.0
  %253 = vmatprep.subr.mxu0 0.0
  %254 = vmatpush1.msra.mxu0 0.0
  %255 = vmatprep.subr.mxu0 0.0
  %256 = vmatpush1.msra.mxu0 0.0
  %257 = vmatprep.subr.mxu0 0.0
  %258 = vmatpush1.msra.mxu0 0.0
  %259 = vmatprep.subr.mxu0 0.0
  %260 = vmatpush1.msra.mxu0 0.0
  %261 = vmatprep.subr.mxu0 0.0
  %262 = vmatpush1.msra.mxu0 0.0
  %263 = vmatprep.subr.mxu0 0.0
  %264 = vmatpush1.msra.mxu0 0.0
  %265 = vmatprep.subr.mxu0 0.0
  %266 = vmatpush1.msra.mxu0 0.0
  %267 = vmatprep.subr.mxu0 0.0
  %268 = vmatpush1.msra.mxu0 0.0
  %269 = vmatprep.subr.mxu0 0.0
  %270 = vmatpush1.msra.mxu0 0.0
  %271 = vmatprep.subr.mxu0 0.0
  %272 = vmatpush1.msra.mxu0 0.0
  %273 = vmatprep.subr.mxu0 0.0
  %274 = vmatpush1.msra.mxu0 0.0
  %275 = vmatprep.subr.mxu0 0.0
  %276 = vmatpush1.msra.mxu0 0.0
  %277 = vmatprep.subr.mxu0 0.0
  %278 = vmatpush1.msra.mxu0 0.0
  %279 = vmatprep.subr.mxu0 0.0
  %280 = vmatpush1.msra.mxu0 0.0
  %281 = vmatprep.subr.mxu0 0.0
  %282 = vmatpush1.msra.mxu0 0.0
  %283 = vmatprep.mubr.f32.mxu0 0.0
  %284 = vmatmul.mubr.f32.gmra.mrb[0].mxu0 %v217
  %v285 = vpop.f32.mrb[0].mxu0
  %v286 = vadd.f32 0.0, %v285
  %v287 = vpop.f32.mrb[0].mxu0
  %v288 = vadd.f32 0.0, %v287
  %289 = vdwg.mxu0
  %s290 = scalar_lea.vmem %s6, 16
  %291 = vst [vmem:[%s290] sm:$0xff] %v286
  %292 = vst [vmem:[%s290 + $0x8] sm:$0xff] %v288
  %v293 = vmul.f32 %v286, %v286
  %v294 = vmul.f32 %v288, %v288
  %v295 = vadd.f32 %v286, %v288
  %v296 = vadd.f32 %v293, %v294
  %v297 = vadd.f32 %v197, %v295
  %v298 = vadd.f32 %v198, %v296
  %299 = vadd.xlane.f32.xlu0 %v297
  %v300 = vpop.xlane.xlu0 %299
  %301 = vadd.xlane.f32.xlu0 %v298
  %v302 = vpop.xlane.xlu0 %301
  %v303 = vld [vmem:[%s4] sm:$0xff]
  %v304 = vld [vmem:[%s5] sm:$0xff]
  %v305 = vmul.f32 %v300, %v64
  %v306 = vmul.f32 %v302, %v64
  %v307 = vmul.f32 %v305, %v305
  %v308 = vsub.f32 %v306, %v307
  %v309 = vmax.f32 %v308, 0.0
  %v310 = vadd.f32 %v309, 1e-05
  %v311 = vrsqrt.pop %v310
  %v312 = vmul.f32 %v303, %v311
  %v313 = vmul.f32 %v305, %v312
  %v314 = vsub.f32 %v304, %v313
  %v315 = vld [vmem:[%s6] sm:$0xff]
  %v316 = vld [vmem:[%s6 + $0x8] sm:$0xff]
  %318 = vset.pattern.permute.xlu0 0
  %319 = vperm.xlu0 %318, %v312
  %v320 = vpop.permute.xlu0 %319
  %v322 = vmul.f32 %v315, %v320
  %v323 = vmul.f32 %v316, %v320
  %325 = vset.pattern.permute.xlu0 0
  %326 = vperm.xlu0 %325, %v314
  %v327 = vpop.permute.xlu0 %326
  %v329 = vadd.f32 %v322, %v327
  %v330 = vadd.f32 %v323, %v327
  %331 = vst [vmem:[%s6] sm:$0xff] %v329
  %332 = vst [vmem:[%s6 + $0x8] sm:$0xff] %v330
  %v333 = vld [vmem:[%s290] sm:$0xff]
  %v334 = vld [vmem:[%s290 + $0x8] sm:$0xff]
  %v335 = vmul.f32 %v333, %v320
  %v336 = vmul.f32 %v334, %v320
  %v337 = vadd.f32 %v335, %v327
  %v338 = vadd.f32 %v336, %v327
  %339 = vst [vmem:[%s290] sm:$0xff] %v337
  %340 = vst [vmem:[%s290 + $0x8] sm:$0xff] %v338
  // Predicated region
  $region26: #{_forward.1} parent=0 // pred_check
    _
  $region27: #{_forward.1} parent=0 // pred_check_branch
    %342 = sbr.rel (0) target = $region29
  $region28: #{_forward.1} parent=0 // pred_region
    _
  $region29: #{_forward.1} parent=0 // pred_fallthru
    _
  // Predicated region
  $region30: #{_forward.1} parent=0 // pred_check
    _
  $region31: #{_forward.1} parent=0 // pred_check_branch
    %344 = sbr.rel (0) target = $region33
  $region32: #{_forward.1} parent=0 // pred_region
    _
  $region33: #{_forward.1} parent=0 // pred_fallthru
    _

</llo_original>
